<compile_context>
chip_gen: v7x
topology: tpu7x:2x2x1
jax: 0.10.0
libtpu: 0.0.40
codegen_flags: <defaults>
</compile_context>

<pallas_src>
import math
from functools import partial

import numpy as np
import jax
import jax.numpy as jnp
from jax.experimental import pallas as pl
from jax.experimental.pallas import tpu as pltpu


# ----------------------------- pe table init -------------------------------

def _build_pe_table(d_model: int, max_seq_len: int) -> jnp.ndarray:
    """Vectorized replica of the PyTorch init loop."""
    pos = jnp.arange(max_seq_len, dtype=jnp.float32)[:, None]             # (L, 1)
    i_even = jnp.arange(0, d_model, 2, dtype=jnp.float32)[None, :]        # (1, D/2)
    sin_part = jnp.sin(pos / jnp.power(10000.0, 2.0 * i_even / d_model))
    cos_part = jnp.cos(pos / jnp.power(10000.0, 2.0 * (i_even + 1.0) / d_model))
    pe = jnp.zeros((max_seq_len, d_model), dtype=jnp.float32)
    pe = pe.at[:, 0::2].set(sin_part)
    pe = pe.at[:, 1::2].set(cos_part)
    return pe


def _build_pe_table_loop(d_model: int, max_seq_len: int) -> jnp.ndarray:
    """Literal transcription of the PyTorch double loop (ground truth for the
    vectorized build — breaks the self-test circularity)."""
    pe = np.zeros((max_seq_len, d_model), dtype=np.float32)
    for pos in range(max_seq_len):
        for i in range(0, d_model, 2):
            pe[pos, i] = math.sin(pos / 10000 ** (2 * i / d_model))
            pe[pos, i + 1] = math.cos(pos / 10000 ** (2 * (i + 1) / d_model))
    return jnp.asarray(pe)


# --------------------------- hardware detection -----------------------------

def _device_kind() -> str:
    try:
        return jax.devices()[0].device_kind.lower()
    except Exception:
        return ""


def _chip_has_bf16_vpu() -> bool:
    # v6e / v7x have bf16 VALUs; v5e (and older) do not.
    k = _device_kind()
    return ("v6" in k) or ("v7" in k)


def _chip_has_two_cores() -> bool:
    # v7x has 2 TensorCores per chip sharing the "parallel" grid axes.
    return "v7" in _device_kind()


def _vmem_capacity_bytes() -> int:
    try:
        return int(pltpu.get_tpu_info().vmem_capacity_bytes)
    except Exception:
        return (64 << 20) if "v7" in _device_kind() else (128 << 20)


# ------------------------------- tiling -------------------------------------

_MAX_UNROLL_BATCHES = 32   # cap on the static per-batch unroll inside the kernel


def _pick_tiles(seq_len: int, n_batch: int, d_model: int, itemsize: int,
                target_block_bytes: int, two_cores: bool):
    """Returns (tS, kb): sequence-tile rows and batches-per-lane-tile."""
    granule = max(8, 32 // itemsize)          # f32 -> 8, bf16 -> 16, int8/fp8 -> 32
    full_row_bytes = n_batch * d_model * itemsize

    if full_row_bytes <= target_block_bytes and n_batch <= _MAX_UNROLL_BATCHES:
        kb = n_batch                           # one lane tile == full (B*D) row
    else:
        # Tile the lane axis in multiples of d_model; keep kb*d_model a
        # multiple of 128 lanes (d_model is even for this module, so such a
        # kb always exists) unless the batch itself is smaller.
        kb_align = 128 // math.gcd(d_model, 128)
        kb_budget = max(1, target_block_bytes // (granule * d_model * itemsize))
        kb_budget = min(kb_budget, _MAX_UNROLL_BATCHES)
        kb = max(kb_align, (kb_budget // kb_align) * kb_align)
        kb = min(kb, n_batch)                  # full lane extent if batch is tiny

    row_bytes = kb * d_model * itemsize
    lane_tiles = pl.cdiv(n_batch, kb)

    ideal = max(1, target_block_bytes // row_bytes)
    steps = 1 if ideal >= seq_len else pl.cdiv(seq_len, ideal)
    if two_cores and lane_tiles == 1 and seq_len >= 2 * granule:
        # v7x: keep an even, >=2 step count so both TensorCores get equal work.
        steps = max(steps, 2)
        if steps % 2:
            steps += 1
    t = pl.cdiv(seq_len, steps)
    if t < seq_len:                            # full-extent blocks need no alignment
        t = ((t + granule - 1) // granule) * granule
        t = min(t, seq_len)
    return max(1, t), kb


# ------------------------------- kernel -------------------------------------

def _pe_add_kernel(x_ref, pe_ref, o_ref, *, scale: float, kb: int,
                   d_model: int, compute_dtype):
    # x_ref / o_ref: (tS, kb*d_model) lane-dense blocks; pe_ref: (tS, d_model)
    # already stored in the compute dtype.
    pe = pe_ref[...]
    for b in range(kb):                               # static unroll: one D-wide
        col = slice(b * d_model, (b + 1) * d_model)   # chunk per batch element
        xb = x_ref[:, col].astype(compute_dtype)
        if scale != 1.0:
            xb = xb * scale                           # weak float -> stays compute dtype
        o_ref[:, col] = (xb + pe).astype(o_ref.dtype)


# ------------------------------- wrapper -------------------------------------

def positional_encoding(x, pe_table, *, mul_by_sqrt: bool = True,
                        block_seq: int | None = None,
                        batches_per_block: int | None = None,
                        target_block_bytes: int | None = None,
                        compute_dtype=None,
                        donate_input: bool = False):
    """x: (S, B, D); pe_table: (max_seq_len, D) f32. Returns (S, B, D)."""
    S, B, D = x.shape
    max_seq_len, d_model = pe_table.shape
    assert d_model == D
    if S + 1 > max_seq_len:
        raise ValueError(
            f"seq_len={S} needs pe rows 1..{S}, but max_seq_len={max_seq_len}")

    itemsize = jnp.dtype(x.dtype).itemsize
    if compute_dtype is None:
        compute_dtype = (jnp.bfloat16
                         if (x.dtype == jnp.bfloat16 and _chip_has_bf16_vpu())
                         else jnp.float32)
    compute_dtype = jnp.dtype(compute_dtype)

    if target_block_bytes is None:
        # ~1/8 of physical VMEM per block: 8 MiB on v7x (64 MiB/TC), 16 MiB on
        # v5e/v6e (128 MiB) — big enough to amortize the ~0.35us/step overhead,
        # small enough that the double-buffered footprint leaves headroom.
        target_block_bytes = min(16 << 20, max(2 << 20, _vmem_capacity_bytes() // 8))

    tS, kb = _pick_tiles(S, B, D, itemsize, target_block_bytes,
                         _chip_has_two_cores())
    if block_seq is not None:
        tS = block_seq
    if batches_per_block is not None:
        kb = batches_per_block

    scale = float(math.sqrt(D)) if mul_by_sqrt else 1.0
    # PyTorch forward adds pe rows 1..S (pe[:, 1:seq_len+1]) — NOT 0..S-1.
    pe_slice = pe_table[1:S + 1].astype(compute_dtype)        # (S, D)

    x2d = x.reshape(S, B * D)                                  # free lane-dense view
    grid = (pl.cdiv(S, tS), pl.cdiv(B, kb))

    # VMEM: in/out blocks double-buffered + pe block + a few per-chunk temps.
    x_blk = tS * kb * D * itemsize
    pe_blk = tS * D * compute_dtype.itemsize
    footprint = 2 * (2 * x_blk + pe_blk) + 4 * tS * D * 4
    vmem_cap = int(0.75 * _vmem_capacity_bytes())
    vmem_limit = max(32 << 20, min(vmem_cap, int(footprint * 1.25) + (4 << 20)))

    cost = pl.CostEstimate(
        flops=2 * S * B * D,
        transcendentals=0,
        bytes_accessed=2 * S * B * D * itemsize
                       + S * D * compute_dtype.itemsize * grid[1],
    )

    out2d = pl.pallas_call(
        partial(_pe_add_kernel, scale=scale, kb=kb, d_model=D,
                compute_dtype=compute_dtype),
        out_shape=jax.ShapeDtypeStruct((S, B * D), x.dtype),
        grid=grid,
        in_specs=[
            pl.BlockSpec((tS, kb * D), lambda i, j: (i, j)),
            pl.BlockSpec((tS, D), lambda i, j: (i, 0)),
        ],
        out_specs=pl.BlockSpec((tS, kb * D), lambda i, j: (i, j)),
        compiler_params=pltpu.CompilerParams(
            dimension_semantics=("parallel", "parallel"),
            vmem_limit_bytes=vmem_limit,
        ),
        cost_estimate=cost,
        # Saves the output HBM allocation when the caller donates x.
        input_output_aliases={0: 0} if donate_input else {},
    )(x2d, pe_slice)

    return out2d.reshape(S, B, D)


# ------------------------------- self-test -----------------------------------

if __name__ == "__main__":
    # Small shape matching the module's use: x is (seq, batch, d_model).
    d_model, max_seq_len, seq_len, batch = 32, 64, 8, 2
    key = jax.random.PRNGKey(0)
    x = jax.random.normal(key, (seq_len, batch, d_model), dtype=jnp.float32)

    pe_table = _build_pe_table(d_model, max_seq_len)
    pe_loop = _build_pe_table_loop(d_model, max_seq_len)   # PyTorch-loop ground truth
    assert jnp.allclose(pe_table, pe_loop, atol=1e-3, rtol=1e-3)

    out = jax.block_until_ready(positional_encoding(x, pe_table, mul_by_sqrt=True))
    ref = x * math.sqrt(d_model) + pe_table[1:seq_len + 1][:, None, :]
    assert out.shape == (seq_len, batch, d_model)
    assert jnp.allclose(out, ref, atol=1e-5, rtol=1e-5)

    # 128-lane-aligned f32 shape that exercises the seq-tiling / grid path.
    S2, B2, D2 = 48, 4, 128
    pe2 = _build_pe_table(D2, 64)
    x2 = jax.random.normal(jax.random.PRNGKey(0), (S2, B2, D2), dtype=jnp.float32)
    out2 = jax.block_until_ready(positional_encoding(x2, pe2))
    ref2 = x2 * math.sqrt(D2) + pe2[1:S2 + 1][:, None, :]
    assert jnp.allclose(out2, ref2, atol=1e-5, rtol=1e-5)

    # bf16 input (bf16-native math on v6e/v7x, f32 math elsewhere).
    x3 = x.astype(jnp.bfloat16)
    out3 = jax.block_until_ready(positional_encoding(x3, pe_table))
    ref3 = x3.astype(jnp.float32) * math.sqrt(d_model) + pe_table[1:seq_len + 1][:, None, :]
    assert out3.dtype == jnp.bfloat16
    assert jnp.allclose(out3.astype(jnp.float32), ref3, atol=0.5, rtol=0.05)

    print("KERNEL_OK")
</pallas_src>

<mosaic_0001>
module attributes {stable_mosaic.version = 11 : i64} {
  func.func @_pe_add_kernel(%arg0: i32, %arg1: i32, %arg2: memref<8x64xf32, #tpu.memory_space<vmem>>, %arg3: memref<8x32xf32, #tpu.memory_space<vmem>>, %arg4: memref<8x64xf32, #tpu.memory_space<vmem>>) attributes {dimension_semantics = [#tpu.dimension_semantics<parallel>, #tpu.dimension_semantics<parallel>], iteration_bounds = array<i64: 1, 1>, scalar_prefetch = 0 : i64, scratch_operands = 0 : i64, tpu.core_type = #tpu.core_type<tc>, window_params = [{transform_indices = @transform_0, window_bounds = array<i64: 8, 64>}, {transform_indices = @transform_1, window_bounds = array<i64: 8, 32>}, {transform_indices = @transform_2, window_bounds = array<i64: 8, 64>}]} {
    %c0 = arith.constant 0 : index
    %c0_0 = arith.constant 0 : index
    %0 = vector.load %arg3[%c0, %c0_0] : memref<8x32xf32, #tpu.memory_space<vmem>>, vector<8x32xf32>
    %c0_1 = arith.constant 0 : index
    %c0_2 = arith.constant 0 : index
    %1 = vector.load %arg2[%c0_1, %c0_2] : memref<8x64xf32, #tpu.memory_space<vmem>>, vector<8x32xf32>
    %cst = arith.constant 5.65685415 : f32
    %2 = vector.broadcast %cst : f32 to vector<8x32xf32>
    %3 = arith.mulf %1, %2 : vector<8x32xf32>
    %4 = arith.addf %3, %0 : vector<8x32xf32>
    %c0_3 = arith.constant 0 : index
    %c0_4 = arith.constant 0 : index
    %5 = vector.load %arg4[%c0_3, %c0_4] : memref<8x64xf32, #tpu.memory_space<vmem>>, vector<8x32xf32>
    tpu.vector_store %arg4[%c0_3, %c0_4], %4 {strides = array<i32>} : memref<8x64xf32, #tpu.memory_space<vmem>>, vector<8x32xf32>,
    %c0_5 = arith.constant 0 : index
    %c32 = arith.constant 32 : index
    %6 = vector.load %arg2[%c0_5, %c32] : memref<8x64xf32, #tpu.memory_space<vmem>>, vector<8x32xf32>
    %cst_6 = arith.constant 5.65685415 : f32
    %7 = vector.broadcast %cst_6 : f32 to vector<8x32xf32>
    %8 = arith.mulf %6, %7 : vector<8x32xf32>
    %9 = arith.addf %8, %0 : vector<8x32xf32>
    %c0_7 = arith.constant 0 : index
    %c32_8 = arith.constant 32 : index
    %10 = vector.load %arg4[%c0_7, %c32_8] : memref<8x64xf32, #tpu.memory_space<vmem>>, vector<8x32xf32>
    tpu.vector_store %arg4[%c0_7, %c32_8], %9 {strides = array<i32>} : memref<8x64xf32, #tpu.memory_space<vmem>>, vector<8x32xf32>,
    return
  }
  func.func @transform_0(%arg0: i32, %arg1: i32) -> (i32, i32) {
    %c0_i32 = arith.constant 0 : i32
    return %arg0, %arg1 : i32, i32
  }
  func.func @transform_1(%arg0: i32, %arg1: i32) -> (i32, i32) {
    %c0_i32 = arith.constant 0 : i32
    %c0_i32_0 = arith.constant 0 : i32
    return %arg0, %c0_i32 : i32, i32
  }
  func.func @transform_2(%arg0: i32, %arg1: i32) -> (i32, i32) {
    %c0_i32 = arith.constant 0 : i32
    return %arg0, %arg1 : i32, i32
  }
}

</mosaic_0001>

<llo_original>
// kernel: tpu_custom_call.1
$region0: #{tpu_custom_call.1}
  #allocation0 [shape = 'u32[]', space=smem, size = 0x4, offset = 0x4, fixed_abs, tag = 'smem constant byte address 0x4 - core index']
  #allocation1 [shape = 'u32[144,128]{1,0:T(1,128)}', space=vmem, size = 0x12000, scoped, tag = 'internal scratch']
  %s0 = inlined_call_operand.hbm [shape: f32[8,64], index: 0, kind: input, shape index: {}]
  %s1 = inlined_call_operand.hbm [shape: f32[8,32], index: 1, kind: input, shape index: {}]
  %s2 = inlined_call_operand.hbm [shape: f32[8,64], index: 2, kind: output, shape index: {}]
  %s3 = sld [smem:[#allocation0]]
  $region26: #{tpu_custom_call.1} parent=0
    _
  %s5 = ssub.s32 1, %s3
  %s6 = scalar_select 0, %s5, %s3
  $region1: #{tpu_custom_call.1} parent=0
    #allocation2 [shape = 'u8[4096]{0}', space=vmem, size = 0x1000, scoped, tag = 'input window, operand 0, single buffered']
    #allocation3 [shape = 's32[1]{0}', space=sflag, size = 0x4, scoped, tag = 'scoped memory for tpu_custom_call.1']
    #allocation4 [shape = 's32[1]{0}', space=sflag, size = 0x4, scoped, tag = 'scoped memory for tpu_custom_call.1']
    #allocation5 [shape = 'u8[4096]{0}', space=vmem, size = 0x1000, scoped, tag = 'input window, operand 1, single buffered']
    #allocation6 [shape = 's32[1]{0}', space=sflag, size = 0x4, scoped, tag = 'scoped memory for tpu_custom_call.1']
    #allocation7 [shape = 'u8[4096]{0}', space=vmem, size = 0x1000, scoped, tag = 'output window, operand 0, single buffered']
    %7 = vsyncpa [#allocation3], 0
    %8 = vsyncpa [#allocation6], 0
    %9 = vsyncpa [#allocation4], 0
    // Predicated region
    $region2: #{tpu_custom_call.1} parent=1 // pred_check
      _
    $region3: #{tpu_custom_call.1} parent=1 // pred_check_branch
      %11 = sbr.rel (0) target = $region5
    $region4: #{tpu_custom_call.1} parent=1 // pred_region
      %s13 = ssub.s32 128, 128
      %14 = vsyncadd [#allocation3], %s13
      %s16 = sshll.u32 [#allocation2], 4
      %s17 = int_to_ptr.vmem [resolvable:$true] %s16
      %19 = dma.hbm_to_vmem [thread:$0]  %s0, 128, %s17, [#allocation3]
    $region5: #{tpu_custom_call.1} parent=1 // pred_fallthru
      _
    // Predicated region
    $region6: #{tpu_custom_call.1} parent=1 // pred_check
      _
    $region7: #{tpu_custom_call.1} parent=1 // pred_check_branch
      %21 = sbr.rel (0) target = $region9
    $region8: #{tpu_custom_call.1} parent=1 // pred_region
      %s23 = ssub.s32 128, 128
      %24 = vsyncadd [#allocation6], %s23
      %s26 = sshll.u32 [#allocation5], 4
      %s27 = int_to_ptr.vmem [resolvable:$true] %s26
      %29 = dma.hbm_to_vmem [thread:$0]  %s1, 128, %s27, [#allocation6]
    $region9: #{tpu_custom_call.1} parent=1 // pred_fallthru
      _
    // Predicated region
    $region10: #{tpu_custom_call.1} parent=1 // pred_check
      _
    $region11: #{tpu_custom_call.1} parent=1 // pred_check_branch
      %31 = sbr.rel (0) target = $region13
    $region12: #{tpu_custom_call.1} parent=1 // pred_region
      %32 = dma.done [#allocation3], 128
    $region13: #{tpu_custom_call.1} parent=1 // pred_fallthru
      _
    // Predicated region
    $region14: #{tpu_custom_call.1} parent=1 // pred_check
      _
    $region15: #{tpu_custom_call.1} parent=1 // pred_check_branch
      %34 = sbr.rel (0) target = $region17
    $region16: #{tpu_custom_call.1} parent=1 // pred_region
      %35 = dma.done [#allocation6], 128
    $region17: #{tpu_custom_call.1} parent=1 // pred_fallthru
      _
    %v36 = vld [vmem:[#allocation5] sm:$0xff]
    %v37 = vld [vmem:[#allocation2] sm:$0xff]
    %v38 = vmul.f32 %v37, 5.656854
    %v39 = vadd.f32 %v38, %v36
    %vm40 = vcmask 261120
    %41 = vst.msk [vmem:[#allocation7] sm:$0xff] %vm40, %v39
    %v42 = vld [vmem:[#allocation2] sm:$0xff]
    %v43 = vmul.f32 %v42, 5.656854
    %45 = vrot.lane.b32.xlu0 %v36, 32
    %v46 = vpop.permute.xlu0 %45
    %v48 = vadd.f32 %v43, %v46
    %vm49 = vcmask 523520
    %50 = vst.msk [vmem:[#allocation7] sm:$0xff] %vm49, %v48
    // Predicated region
    $region18: #{tpu_custom_call.1} parent=1 // pred_check
      _
    $region19: #{tpu_custom_call.1} parent=1 // pred_check_branch
      %52 = sbr.rel (0) target = $region21
    $region20: #{tpu_custom_call.1} parent=1 // pred_region
      %s54 = ssub.s32 128, 128
      %55 = vsyncadd [#allocation4], %s54
      %s57 = sshll.u32 [#allocation7], 4
      %s58 = int_to_ptr.vmem [resolvable:$true] %s57
      %60 = dma.vmem_to_hbm [thread:$0]  %s58, 128, %s2, [#allocation4]
    $region21: #{tpu_custom_call.1} parent=1 // pred_fallthru
      _
    // Predicated region
    $region22: #{tpu_custom_call.1} parent=1 // pred_check
      _
    $region23: #{tpu_custom_call.1} parent=1 // pred_check_branch
      %62 = sbr.rel (0) target = $region25
    $region24: #{tpu_custom_call.1} parent=1 // pred_region
      %63 = dma.done [#allocation4], 128
    $region25: #{tpu_custom_call.1} parent=1 // pred_fallthru
      _
    %64 = vsyncpa [#allocation3], 1
    %65 = vsyncpa [#allocation6], 1
    %66 = vsyncpa [#allocation4], 1

</llo_original>
